<compile_context>
chip_gen: v7x
topology: tpu7x:2x2x1
jax: 0.10.0
libtpu: 0.0.40
codegen_flags: <defaults>
</compile_context>

<pallas_src>
import math
from functools import partial

import jax
import jax.numpy as jnp
from jax.experimental import pallas as pl
from jax.experimental.pallas import tpu as pltpu


_TARGET_GRID_STEPS = 8            # keep >= ~8 grid steps so v7x shards both TensorCores
_TILE_BYTES_PER_PLANE = 2 << 20   # ~2 MiB per plane per step (~4 MiB moved per step)
_MIN_PALLAS_ELEMS = 1 << 14       # below this, kernel-launch overhead dominates -> plain jnp


def _round_up(a: int, b: int) -> int:
    return (a + b - 1) // b * b


def _dc_kernel(c_ref, x_ref, o_ref):
    # x is the interleaved stream [re0, im0, re1, im1, ...] packed lane-dense.
    # A DC pair occupies 4 consecutive lanes [re_a, im_a, re_b, im_b]:
    #   out_re_a = t*re_a - k*im_b   (partner at l+3)
    #   out_im_a = t*im_a + k*re_b   (partner at l+1)
    #   out_re_b = t*re_b - k*im_a   (partner at l-1)
    #   out_im_b = t*im_b + k*re_a   (partner at l-3)
    # Signs and the +/-k gating (zero on passthrough lanes) are pre-baked into
    # the per-lane gate rows of c_ref, so the kernel is 4 XLU rolls + VPU fma.
    x = x_ref[...]                       # (TM, L)
    L = x.shape[-1]
    g_p3 = c_ref[0:1, :]                 # -k on re_a lanes  (needs x[l+3])
    g_p1 = c_ref[1:2, :]                 # +k on im_a lanes  (needs x[l+1])
    g_m1 = c_ref[2:3, :]                 # -k on re_b lanes  (needs x[l-1])
    g_m3 = c_ref[3:4, :]                 # +k on im_b lanes  (needs x[l-3])
    d = c_ref[4:5, :]                    # t on active lanes, 1 on passthrough lanes

    out = d * x
    out = out + g_p3 * pltpu.roll(x, L - 3, 1)   # lane l -> x[l+3]
    out = out + g_p1 * pltpu.roll(x, L - 1, 1)   # lane l -> x[l+1]
    out = out + g_m1 * pltpu.roll(x, 1, 1)       # lane l -> x[l-1]
    out = out + g_m3 * pltpu.roll(x, 3, 1)       # lane l -> x[l-3]
    o_ref[...] = out


def _build_constants(weight, *, sample_arch, offset, n_waveguides, lane_width):
    """Pack diagonal + 4 shift gates for one interleaved 2W chunk, tiled to L lanes."""
    W = n_waveguides
    two_w = 2 * W
    max_arch = (W - offset) // 2
    sa = int(min(sample_arch, max_arch))
    t = weight[:sa].astype(jnp.float32)
    k = jnp.sqrt(1.0 - t * t + 1e-6)

    start = 2 * offset                       # first interleaved lane of the active window
    stop = start + 4 * sa                    # one past the last active lane

    d_chunk = jnp.ones((two_w,), jnp.float32)
    d_chunk = d_chunk.at[start:stop].set(jnp.repeat(t, 4))

    g_chunk = jnp.zeros((4, two_w), jnp.float32)
    g_chunk = g_chunk.at[0, start + 0:stop:4].set(-k)   # re_a lanes, partner at l+3
    g_chunk = g_chunk.at[1, start + 1:stop:4].set(k)    # im_a lanes, partner at l+1
    g_chunk = g_chunk.at[2, start + 2:stop:4].set(-k)   # re_b lanes, partner at l-1
    g_chunk = g_chunk.at[3, start + 3:stop:4].set(k)    # im_b lanes, partner at l-3

    pack = lane_width // two_w
    const = jnp.zeros((8, lane_width), jnp.float32)
    const = const.at[0:4, :].set(jnp.tile(g_chunk, (1, pack)))
    const = const.at[4, :].set(jnp.tile(d_chunk, pack))
    return const


def _c64_to_f32_pairs(x):
    # lax.bitcast_convert_type does not support complex dtypes, so a zero-copy
    # view is not expressible; under jit this is a single fused interleave pass.
    return jnp.stack([jnp.real(x), jnp.imag(x)], axis=-1)


def _f32_pairs_to_c64(y):
    # Fuses (under jit) into a single pass reading the f32 plane, writing complex64.
    return jax.lax.complex(y[..., 0], y[..., 1])


@partial(jax.jit, static_argnames=("sample_arch", "offset", "n_waveguides"))
def _forward_pallas(x, weight, *, sample_arch, offset, n_waveguides):
    W = n_waveguides
    lead = x.shape[:-1]
    two_w = 2 * W
    # Lane-dense row width: multiple of 128 (full vreg) and of 2W (whole chunks per row).
    L = (two_w * 128) // math.gcd(two_w, 128)

    const = _build_constants(weight, sample_arch=sample_arch, offset=offset,
                             n_waveguides=W, lane_width=L)

    xf = _c64_to_f32_pairs(x)                         # lead + (W, 2) float32
    total = math.prod(lead) * two_w
    rows = pl.cdiv(total, L)
    rows_pad = max(_round_up(rows, 8), 8)             # sublane-granular only (no tm round-up)
    flat = xf.reshape(-1)
    pad = rows_pad * L - total
    if pad:
        flat = jnp.pad(flat, (0, pad))                # fuses with the interleave under jit
    xrows = flat.reshape(rows_pad, L)

    # Row tile: up to ~2 MiB per plane, but keep >= ~8 grid steps when possible.
    tm_cap = max(8, _round_up(_TILE_BYTES_PER_PLANE // (4 * L), 8))
    tm = max(8, min(tm_cap, _round_up(pl.cdiv(rows_pad, _TARGET_GRID_STEPS), 8)))
    grid = (pl.cdiv(rows_pad, tm),)                   # partial last block is masked by Pallas

    cost = pl.CostEstimate(
        flops=int(9 * rows_pad * L),
        transcendentals=0,
        bytes_accessed=int(2 * rows_pad * L * 4 + 8 * L * 4),
    )

    out = pl.pallas_call(
        _dc_kernel,
        out_shape=jax.ShapeDtypeStruct((rows_pad, L), jnp.float32),
        grid_spec=pltpu.PrefetchScalarGridSpec(
            num_scalar_prefetch=0,
            grid=grid,
            in_specs=[pl.BlockSpec((8, L), lambda i: (0, 0)),     # packed d + gates
                      pl.BlockSpec((tm, L), lambda i: (i, 0))],   # interleaved stream
            out_specs=pl.BlockSpec((tm, L), lambda i: (i, 0))),
        compiler_params=pltpu.CompilerParams(
            dimension_semantics=("parallel",)),
        cost_estimate=cost,
        input_output_aliases={1: 0},    # result written in place over the packed input plane
    )(const, xrows)

    y = out.reshape(-1)[:total].reshape(lead + (W, 2))
    return _f32_pairs_to_c64(y).astype(jnp.complex64)


def super_dc_front_share_forward(x, weight, *, sample_arch, offset, n_waveguides,
                                 force_pallas=False):
    """Pallas implementation of SuperDCFrontShareLayer.forward
    (trainable=False, binary=False, dc_noise_std=0)."""
    x = jnp.asarray(x)
    if not jnp.issubdtype(x.dtype, jnp.complexfloating):
        x = x.astype(jnp.complex64)
    else:
        x = x.astype(jnp.complex64)
    assert x.shape[-1] == n_waveguides

    n_elems = math.prod(x.shape)
    if not force_pallas and n_elems < _MIN_PALLAS_ELEMS:
        # Tiny inputs: launch/reshape overhead dominates -> pure jnp path.
        return reference_forward(x, weight, sample_arch=sample_arch, offset=offset,
                                 n_waveguides=n_waveguides)
    return _forward_pallas(x, weight, sample_arch=sample_arch, offset=offset,
                           n_waveguides=n_waveguides)


def reference_forward(x, weight, *, sample_arch, offset, n_waveguides):
    """Pure-jnp reference mirroring the PyTorch forward."""
    x = x.astype(jnp.complex64)
    max_arch = (n_waveguides - offset) // 2
    sa = int(min(sample_arch, max_arch))
    nsw = 2 * sa
    w = weight[:sa].astype(jnp.float32)
    t = w.astype(jnp.complex64)
    k = jnp.sqrt(1.0 - w * w + 1e-6)
    w12 = (1j * k).astype(jnp.complex64)
    mat = jnp.stack([t, w12, w12, t], axis=-1).reshape(sa, 2, 2)
    xa = x[..., offset:offset + nsw]
    lead = x.shape[:-1]
    v = xa.reshape((-1, sa, 2, 1))
    o = jnp.einsum('sij,nsjk->nsik', mat, v).reshape(lead + (nsw,))
    if nsw < x.shape[-1]:
        return jnp.concatenate([x[..., :offset], o, x[..., offset + nsw:]], axis=-1)
    return o


if __name__ == "__main__":
    n_waveguides = 16
    key = jax.random.PRNGKey(0)

    # (lead shape, offset, sample_arch) -- covers passthrough lanes, odd offset,
    # a partial last grid block, and flat padding of the packed stream.
    cases = [
        ((2, 4, 16), 2, 6),     # main demo: x shape [2, 4, 16, 16]
        ((2, 9, 16), 3, 5),     # odd offset + partial last grid block
        ((3, 5), 0, 8),         # full-coverage window (nsw == W), padded to 8 rows
    ]

    for idx, (lead, offset, sample_arch) in enumerate(cases):
        key, kw, kr, ki = jax.random.split(key, 4)
        max_arch = (n_waveguides - offset) // 2
        if idx == 0:
            # Module default init: reset_parameters() -> constant sqrt(2)/2.
            weight = jnp.full((max_arch,), 2.0 ** 0.5 / 2.0, dtype=jnp.float32)
        else:
            weight = jax.random.uniform(kw, (max_arch,), minval=0.1, maxval=0.95,
                                        dtype=jnp.float32)
        x_re = jax.random.normal(kr, lead + (n_waveguides,), dtype=jnp.float32)
        x_im = jax.random.normal(ki, lead + (n_waveguides,), dtype=jnp.float32)
        x = (x_re + 1j * x_im).astype(jnp.complex64)

        out = super_dc_front_share_forward(
            x, weight, sample_arch=sample_arch, offset=offset,
            n_waveguides=n_waveguides, force_pallas=True)
        out = jax.block_until_ready(out)

        ref = reference_forward(
            x, weight, sample_arch=sample_arch, offset=offset,
            n_waveguides=n_waveguides)
        assert out.shape == ref.shape and out.dtype == jnp.complex64
        assert jnp.allclose(out, ref, atol=1e-5, rtol=1e-5), f"mismatch in case {idx}"

    print("KERNEL_OK")
</pallas_src>

<mosaic_0001>
module attributes {stable_mosaic.version = 11 : i64} {
  func.func @_dc_kernel(%arg0: i32, %arg1: memref<8x128xf32, #tpu.memory_space<vmem>>, %arg2: memref<8x128xf32, #tpu.memory_space<vmem>>, %arg3: memref<8x128xf32, #tpu.memory_space<vmem>>) attributes {dimension_semantics = [#tpu.dimension_semantics<parallel>], iteration_bounds = array<i64: 4>, scalar_prefetch = 0 : i64, scratch_operands = 0 : i64, tpu.core_type = #tpu.core_type<tc>, window_params = [{pipeline_mode = #tpu.pipeline_mode<synchronous>, transform_indices = @transform_0, window_bounds = array<i64: 8, 128>}, {transform_indices = @transform_1, window_bounds = array<i64: 8, 128>}, {transform_indices = @transform_2, window_bounds = array<i64: 8, 128>}]} {
    %c0 = arith.constant 0 : index
    %c0_0 = arith.constant 0 : index
    %0 = vector.load %arg2[%c0, %c0_0] : memref<8x128xf32, #tpu.memory_space<vmem>>, vector<8x128xf32>
    %c0_1 = arith.constant 0 : index
    %c0_2 = arith.constant 0 : index
    %1 = vector.load %arg1[%c0_1, %c0_2] : memref<8x128xf32, #tpu.memory_space<vmem>>, vector<1x128xf32>
    %c1 = arith.constant 1 : index
    %c0_3 = arith.constant 0 : index
    %2 = vector.load %arg1[%c1, %c0_3] : memref<8x128xf32, #tpu.memory_space<vmem>>, vector<1x128xf32>
    %c2 = arith.constant 2 : index
    %c0_4 = arith.constant 0 : index
    %3 = vector.load %arg1[%c2, %c0_4] : memref<8x128xf32, #tpu.memory_space<vmem>>, vector<1x128xf32>
    %c3 = arith.constant 3 : index
    %c0_5 = arith.constant 0 : index
    %4 = vector.load %arg1[%c3, %c0_5] : memref<8x128xf32, #tpu.memory_space<vmem>>, vector<1x128xf32>
    %c4 = arith.constant 4 : index
    %c0_6 = arith.constant 0 : index
    %5 = vector.load %arg1[%c4, %c0_6] : memref<8x128xf32, #tpu.memory_space<vmem>>, vector<1x128xf32>
    %6 = vector.broadcast %5 : vector<1x128xf32> to vector<8x128xf32>
    %7 = arith.mulf %6, %0 : vector<8x128xf32>
    %c125_i32 = arith.constant 125 : i32
    %8 = tpu.dynamic_rotate %0 by %c125_i32 dim 1 : vector<8x128xf32>, i32 -> vector<8x128xf32>
    %9 = vector.broadcast %1 : vector<1x128xf32> to vector<8x128xf32>
    %10 = arith.mulf %9, %8 : vector<8x128xf32>
    %11 = arith.addf %7, %10 : vector<8x128xf32>
    %c127_i32 = arith.constant 127 : i32
    %12 = tpu.dynamic_rotate %0 by %c127_i32 dim 1 : vector<8x128xf32>, i32 -> vector<8x128xf32>
    %13 = vector.broadcast %2 : vector<1x128xf32> to vector<8x128xf32>
    %14 = arith.mulf %13, %12 : vector<8x128xf32>
    %15 = arith.addf %11, %14 : vector<8x128xf32>
    %c1_i32 = arith.constant 1 : i32
    %16 = tpu.dynamic_rotate %0 by %c1_i32 dim 1 : vector<8x128xf32>, i32 -> vector<8x128xf32>
    %17 = vector.broadcast %3 : vector<1x128xf32> to vector<8x128xf32>
    %18 = arith.mulf %17, %16 : vector<8x128xf32>
    %19 = arith.addf %15, %18 : vector<8x128xf32>
    %c3_i32 = arith.constant 3 : i32
    %20 = tpu.dynamic_rotate %0 by %c3_i32 dim 1 : vector<8x128xf32>, i32 -> vector<8x128xf32>
    %21 = vector.broadcast %4 : vector<1x128xf32> to vector<8x128xf32>
    %22 = arith.mulf %21, %20 : vector<8x128xf32>
    %23 = arith.addf %19, %22 : vector<8x128xf32>
    %c0_7 = arith.constant 0 : index
    %c0_8 = arith.constant 0 : index
    %24 = vector.load %arg3[%c0_7, %c0_8] : memref<8x128xf32, #tpu.memory_space<vmem>>, vector<8x128xf32>
    tpu.vector_store %arg3[%c0_7, %c0_8], %23 {strides = array<i32>} : memref<8x128xf32, #tpu.memory_space<vmem>>, vector<8x128xf32>,
    return
  }
  func.func @transform_0(%arg0: i32) -> (i32, i32) {
    %c0_i32 = arith.constant 0 : i32
    %c0_i32_0 = arith.constant 0 : i32
    %c0_i32_1 = arith.constant 0 : i32
    return %c0_i32, %c0_i32_0 : i32, i32
  }
  func.func @transform_1(%arg0: i32) -> (i32, i32) {
    %c0_i32 = arith.constant 0 : i32
    %c0_i32_0 = arith.constant 0 : i32
    return %arg0, %c0_i32 : i32, i32
  }
  func.func @transform_2(%arg0: i32) -> (i32, i32) {
    %c0_i32 = arith.constant 0 : i32
    %c0_i32_0 = arith.constant 0 : i32
    return %arg0, %c0_i32 : i32, i32
  }
}

</mosaic_0001>

<llo_original>
// kernel: tile.18
$region0: #{tile.18}
  #allocation0 [shape = 's32[1]{0}', space=sflag, size = 0x4, scoped, tag = 'scoped memory for tile.18']
  %s0 = inlined_call_operand.vmem [shape: f32[32], index: 0, kind: input, shape index: {}]
  %s1 = inlined_call_operand.vmem [shape: f32[4,32], index: 1, kind: output, shape index: {}]
  // Predicated region
  $region2: #{tile.18} parent=0 // pred_check
    _
  $region3: #{tile.18} parent=0 // pred_check_branch
    %3 = sbr.rel (0) target = $region5
  $region4: #{tile.18} parent=0 // pred_region
    _
  $region5: #{tile.18} parent=0 // pred_fallthru
    _
  %v4 = vld [vmem:[%s0] ss:$0 sm:$0xff]
  %5 = vst [vmem:[%s1] sm:$0xf] %v4

// kernel: custom-call.1
$region0: #{custom-call.1}
  %s0 = inlined_call_operand.hbm [shape: c64[2,4,16,16], index: 0, kind: input, shape index: {}]
  %s1 = inlined_call_operand.vmem [shape: f32[2,4,16,16], index: 1, kind: output, shape index: {}]
  %s2 = scalar_lea.hbm %s0, 2048
  $region1: #{custom-call.1} parent=0
    #allocation0 [shape = 's32[1]{0}', space=sflag, size = 0x4, scoped, tag = 'scoped memory for custom-call.1']
    %3 = vsyncpa [#allocation0], 0
    %s4 = sshll.u32 %s1, 4
    %s5 = int_to_ptr.vmem [resolvable:$true] %s4
    %7 = dma.hbm_to_vmem [thread:$0]  %s2, 2048, %s5, [#allocation0]
    %8 = dma.done [#allocation0], 2048
    %9 = vsyncpa [#allocation0], 1

// kernel: custom-call
$region0: #{custom-call}
  %s0 = inlined_call_operand.hbm [shape: c64[2,4,16,16], index: 0, kind: input, shape index: {}]
  %s1 = inlined_call_operand.vmem [shape: f32[2,4,16,16], index: 1, kind: output, shape index: {}]
  $region1: #{custom-call} parent=0
    #allocation0 [shape = 's32[1]{0}', space=sflag, size = 0x4, scoped, tag = 'scoped memory for custom-call']
    %2 = vsyncpa [#allocation0], 0
    %s3 = sshll.u32 %s1, 4
    %s4 = int_to_ptr.vmem [resolvable:$true] %s3
    %6 = dma.hbm_to_vmem [thread:$0]  %s0, 2048, %s4, [#allocation0]
    %7 = dma.done [#allocation0], 2048
    %8 = vsyncpa [#allocation0], 1

// kernel: _forward_pallas.1
$region0: #{_forward_pallas.1}
  #allocation0 [shape = 'u32[]', space=smem, size = 0x4, offset = 0x4, fixed_abs, tag = 'smem constant byte address 0x4 - core index']
  #allocation1 [shape = 'u32[144,128]{1,0:T(1,128)}', space=vmem, size = 0x12000, scoped, tag = 'internal scratch']
  %s0 = inlined_call_operand.vmem [shape: f32[8,128], index: 0, kind: input, shape index: {}]
  %s1 = inlined_call_operand.vmem [shape: f32[32,128], index: 1, kind: input, shape index: {}, may-alias: {1,2}]
  %s2 = inlined_call_operand.vmem [shape: f32[32,128], index: 2, kind: output, shape index: {}, may-alias: {1,2}]
  %s3 = sld [smem:[#allocation0]]
  $region41: #{_forward_pallas.1} parent=0
    _
  %s5 = ssub.s32 1, %s3
  %s6 = scalar_select 0, %s5, %s3
  loop: start=0, step=1, limit=6
  $region2: #{_forward_pallas.1} parent=0 // loop_pre_header
    _
  $region3: #{_forward_pallas.1} parent=0 // loop_header
    %s8 = sphi 0, %s12
    %p9 = scmp.ge.s32.totalorder %s8, 6
    %s16 = sphi 0, %s16
    %s18 = sphi 0, %s16
    %s19 = sphi 0, %s18
    %s33 = sphi 0, %s19
    %s39 = sphi 0, %s41
    %s42 = sphi 0, %s39
    %s43 = sphi 0, %s42
    %s59 = sphi 0, %s43
    %s65 = sphi 0, %s67
    %s68 = sphi 0, %s65
    %s69 = sphi 0, %s68
    %s85 = sphi 0, %s69
  $region4: #{_forward_pallas.1} parent=0 // loop_header_branch
    %11 = sbr.rel (%p9) target = $region8
  $region5: #{_forward_pallas.1} parent=0 // loop_body
    %s13 = ssub.s32 %s8, 1
    %s14 = ssub.s32 %s8, 2
    %s15 = sadd.s32 %s8, 1
    %s17 = sadd.s32 %s16, 1
    %p20 = scmp.eq.s32.totalorder %s8, 3
    %p21 = scmp.ne.s32.totalorder %s16, %s18
    %p22 = scmp.eq.s32.totalorder %s8, 0
    %p23 = por %p21, %p22
    %p24 = scmp.ne.s32.totalorder %s16, %s18
    %p25 = scmp.eq.s32.totalorder %s13, 3
    %p26 = por %p24, %p25
    %p27 = scmp.ne.s32.totalorder %s18, %s19
    %p28 = scmp.eq.s32.totalorder %s13, 0
    %p29 = por %p27, %p28
    %p30 = scmp.ne.s32.totalorder %s18, %s19
    %p31 = scmp.eq.s32.totalorder %s14, 3
    %p32 = por %p30, %p31
    %p34 = scmp.ne.s32.totalorder %s19, %s33
    %p35 = scmp.eq.s32.totalorder %s14, 0
    %p36 = por %p34, %p35
    %s37 = ssub.s32 %s8, %s15
    %p38 = scmp.eq.s32.totalorder %s37, 0
    %s40 = sadd.s32 %s39, 1
    %s41 = scalar_select %p38, %s39, %s40
    %p44 = pneg %p38
    %p45 = scmp.eq.s32.totalorder %s8, 3
    %p46 = por %p44, %p45
    %p47 = scmp.ne.s32.totalorder %s39, %s42
    %p48 = scmp.eq.s32.totalorder %s8, 0
    %p49 = por %p47, %p48
    %p50 = scmp.ne.s32.totalorder %s39, %s42
    %p51 = scmp.eq.s32.totalorder %s13, 3
    %p52 = por %p50, %p51
    %p53 = scmp.ne.s32.totalorder %s42, %s43
    %p54 = scmp.eq.s32.totalorder %s13, 0
    %p55 = por %p53, %p54
    %p56 = scmp.ne.s32.totalorder %s42, %s43
    %p57 = scmp.eq.s32.totalorder %s14, 3
    %p58 = por %p56, %p57
    %p60 = scmp.ne.s32.totalorder %s43, %s59
    %p61 = scmp.eq.s32.totalorder %s14, 0
    %p62 = por %p60, %p61
    %s63 = ssub.s32 %s8, %s15
    %p64 = scmp.eq.s32.totalorder %s63, 0
    %s66 = sadd.s32 %s65, 1
    %s67 = scalar_select %p64, %s65, %s66
    %p70 = pneg %p64
    %p71 = scmp.eq.s32.totalorder %s8, 3
    %p72 = por %p70, %p71
    %p73 = scmp.ne.s32.totalorder %s65, %s68
    %p74 = scmp.eq.s32.totalorder %s8, 0
    %p75 = por %p73, %p74
    %p76 = scmp.ne.s32.totalorder %s65, %s68
    %p77 = scmp.eq.s32.totalorder %s13, 3
    %p78 = por %p76, %p77
    %p79 = scmp.ne.s32.totalorder %s68, %s69
    %p80 = scmp.eq.s32.totalorder %s13, 0
    %p81 = por %p79, %p80
    %p82 = scmp.ne.s32.totalorder %s68, %s69
    %p83 = scmp.eq.s32.totalorder %s14, 3
    %p84 = por %p82, %p83
    %p86 = scmp.ne.s32.totalorder %s69, %s85
    %p87 = scmp.eq.s32.totalorder %s14, 0
    %p88 = por %p86, %p87
    %p89 = scmp.le.s32.totalorder 1, %s8
    %p90 = scmp.lt.s32.totalorder %s8, 5
    %p91 = pnand %p89, %p90
    %p92 = pneg %p91
    // Predicated region
    $region9: #{_forward_pallas.1} parent=5 // pred_check
      _
    $region10: #{_forward_pallas.1} parent=5 // pred_check_branch
      %94 = sbr.rel (%p91) target = $region12
    $region11: #{_forward_pallas.1} parent=5 // pred_region
      %s95 = ssub.s32 %s8, 1
      // Predicated region
      $region13: #{_forward_pallas.1} parent=11 // pred_check
        %p96 = pneg %p29
      $region14: #{_forward_pallas.1} parent=11 // pred_check_branch
        %98 = sbr.rel (%p96) target = $region16
      $region15: #{_forward_pallas.1} parent=11 // pred_region
        _
      $region16: #{_forward_pallas.1} parent=11 // pred_fallthru
        _
    $region12: #{_forward_pallas.1} parent=5 // pred_fallthru
      _
    %p99 = scmp.lt.s32.totalorder %s8, 4
    // Predicated region
    $region17: #{_forward_pallas.1} parent=5 // pred_check
      %p100 = pneg %p99
    $region18: #{_forward_pallas.1} parent=5 // pred_check_branch
      %102 = sbr.rel (%p100) target = $region20
    $region19: #{_forward_pallas.1} parent=5 // pred_region
      // Predicated region
      $region21: #{_forward_pallas.1} parent=19 // pred_check
        %p103 = pneg %p49
      $region22: #{_forward_pallas.1} parent=19 // pred_check_branch
        %105 = sbr.rel (%p103) target = $region24
      $region23: #{_forward_pallas.1} parent=19 // pred_region
        %p106 = scmp.lt.s32.totalorder %s8, 3
        %s107 = scalar_select %p106, %s8, 3
        %s108 = smul.addr %s107, 8
        %s109 = scalar_lea.vmem %s1, %s108
      $region24: #{_forward_pallas.1} parent=19 // pred_fallthru
        _
    $region20: #{_forward_pallas.1} parent=5 // pred_fallthru
      _
    %p110 = scmp.le.s32.totalorder 1, %s8
    %p111 = scmp.lt.s32.totalorder %s8, 5
    %p112 = pnand %p110, %p111
    %p113 = pneg %p112
    // Predicated region
    $region25: #{_forward_pallas.1} parent=5 // pred_check
      _
    $region26: #{_forward_pallas.1} parent=5 // pred_check_branch
      %115 = sbr.rel (%p112) target = $region28
    $region27: #{_forward_pallas.1} parent=5 // pred_region
      %s116 = ssub.s32 %s8, 1
      %p117 = pneg %p29
      %p118 = pneg %p26
      %p119 = scmp.lt.s32.totalorder %s13, 3
      %s120 = scalar_select %p119, %s13, 3
      %s121 = smul.addr %s120, 8
      %s122 = scalar_lea.vmem %s1, %s121
      %p123 = pneg %p55
      %p124 = pneg %p52
      %p125 = pneg %p81
      %p126 = pneg %p78
      %p127 = scmp.lt.s32.totalorder %s13, 3
      %s128 = scalar_select %p127, %s13, 3
      %s129 = smul.addr %s128, 8
      %s130 = scalar_lea.vmem %s2, %s129
      %p131 = scmp.lt.s32.totalorder %s13, 3
      %s132 = scalar_select %p131, %s13, 3
      %s133 = smul.addr %s132, 8
      %s134 = scalar_lea.vmem %s1, %s133
      %p135 = scmp.lt.s32.totalorder %s13, 3
      %s136 = scalar_select %p135, %s13, 3
      %s137 = smul.addr %s136, 8
      %s138 = scalar_lea.vmem %s2, %s137
      %v139 = vld [vmem:[%s134] sm:$0xff]
      %v140 = vld [vmem:[%s0] sm:$0x1]
      %v141 = vld [vmem:[%s0 + $0x1] sm:$0x1]
      %v142 = vld [vmem:[%s0 + $0x2] sm:$0x1]
      %v143 = vld [vmem:[%s0 + $0x3] sm:$0x1]
      %v144 = vld [vmem:[%s0 + $0x4] sm:$0x1]
      %v145 = vlaneseq
      %v146 = vshrl.u32 %v145, 7
      %v147 = vsub.s32 0, %v146
      %v148 = vrot.slane %v144, %v147
      %v149 = vmul.f32 %v148, %v139
      %150 = vrot.lane.b32.xlu0 %v139, 125
      %v151 = vpop.permute.xlu0 %150
      %v152 = vlaneseq
      %v153 = vshrl.u32 %v152, 7
      %v154 = vsub.s32 0, %v153
      %v155 = vrot.slane %v140, %v154
      %v156 = vmul.f32 %v155, %v151
      %v157 = vadd.f32 %v149, %v156
      %158 = vrot.lane.b32.xlu0 %v139, 127
      %v159 = vpop.permute.xlu0 %158
      %v160 = vlaneseq
      %v161 = vshrl.u32 %v160, 7
      %v162 = vsub.s32 0, %v161
      %v163 = vrot.slane %v141, %v162
      %v164 = vmul.f32 %v163, %v159
      %v165 = vadd.f32 %v157, %v164
      %166 = vrot.lane.b32.xlu0 %v139, 1
      %v167 = vpop.permute.xlu0 %166
      %v168 = vlaneseq
      %v169 = vshrl.u32 %v168, 7
      %v170 = vsub.s32 0, %v169
      %v171 = vrot.slane %v142, %v170
      %v172 = vmul.f32 %v171, %v167
      %v173 = vadd.f32 %v165, %v172
      %174 = vrot.lane.b32.xlu0 %v139, 3
      %v175 = vpop.permute.xlu0 %174
      %v176 = vlaneseq
      %v177 = vshrl.u32 %v176, 7
      %v178 = vsub.s32 0, %v177
      %v179 = vrot.slane %v143, %v178
      %v180 = vmul.f32 %v179, %v175
      %v181 = vadd.f32 %v173, %v180
      %182 = vst [vmem:[%s138] sm:$0xff] %v181
      %p183 = scmp.lt.s32.totalorder %s13, 3
      %s184 = scalar_select %p183, %s13, 3
      %s185 = smul.addr %s184, 8
      %s186 = scalar_lea.vmem %s2, %s185
      // Predicated region
      $region29: #{_forward_pallas.1} parent=27 // pred_check
        %p187 = pneg %p78
      $region30: #{_forward_pallas.1} parent=27 // pred_check_branch
        %189 = sbr.rel (%p187) target = $region32
      $region31: #{_forward_pallas.1} parent=27 // pred_region
        _
      $region32: #{_forward_pallas.1} parent=27 // pred_fallthru
        _
    $region28: #{_forward_pallas.1} parent=5 // pred_fallthru
      _
    %p190 = scmp.le.s32.totalorder 2, %s8
    // Predicated region
    $region33: #{_forward_pallas.1} parent=5 // pred_check
      %p191 = pneg %p190
    $region34: #{_forward_pallas.1} parent=5 // pred_check_branch
      %193 = sbr.rel (%p191) target = $region36
    $region35: #{_forward_pallas.1} parent=5 // pred_region
      %s194 = ssub.s32 %s8, 2
      // Predicated region
      $region37: #{_forward_pallas.1} parent=35 // pred_check
        %p195 = pneg %p84
      $region38: #{_forward_pallas.1} parent=35 // pred_check_branch
        %197 = sbr.rel (%p195) target = $region40
      $region39: #{_forward_pallas.1} parent=35 // pred_region
        %p198 = scmp.lt.s32.totalorder %s14, 3
        %s199 = scalar_select %p198, %s14, 3
        %s200 = smul.addr %s199, 8
        %s201 = scalar_lea.vmem %s2, %s200
      $region40: #{_forward_pallas.1} parent=35 // pred_fallthru
        _
    $region36: #{_forward_pallas.1} parent=5 // pred_fallthru
      _
  $region6: #{_forward_pallas.1} parent=0 // loop_footer
    %s12 = sadd.s32 1, %s8
  $region7: #{_forward_pallas.1} parent=0 // loop_footer_branch
    %7 = sbr.rel target = $region3
  $region8: #{_forward_pallas.1} parent=0 // loop_exit
    _

// kernel: custom-call.2
$region0: #{custom-call.2}
  %s0 = inlined_call_operand.vmem [shape: f32[2,4,16,16], index: 0, kind: input, shape index: {}]
  %s1 = inlined_call_operand.vmem [shape: f32[2,4,16,16], index: 1, kind: input, shape index: {}]
  %s2 = inlined_call_operand.hbm [shape: c64[2,4,16,16], index: 2, kind: output, shape index: {}]
  %s3 = scalar_lea.hbm %s2, 2048
  $region1: #{custom-call.2} parent=0
    #allocation0 [shape = 's32[1]{0}', space=sflag, size = 0x4, scoped, tag = 'scoped memory for custom-call.2']
    %4 = vsyncpa [#allocation0], 0
    %s5 = sshll.u32 %s0, 4
    %s6 = int_to_ptr.vmem [resolvable:$true] %s5
    %8 = dma.vmem_to_hbm [thread:$0]  %s6, 2048, %s2, [#allocation0]
    %9 = dma.done [#allocation0], 2048
    %10 = vsyncpa [#allocation0], 1
  $region2: #{custom-call.2} parent=0
    #allocation1 [shape = 's32[1]{0}', space=sflag, size = 0x4, scoped, tag = 'scoped memory for custom-call.2']
    %11 = vsyncpa [#allocation1], 0
    %s12 = sshll.u32 %s1, 4
    %s13 = int_to_ptr.vmem [resolvable:$true] %s12
    %15 = dma.vmem_to_hbm [thread:$0]  %s13, 2048, %s3, [#allocation1]
    %16 = dma.done [#allocation1], 2048
    %17 = vsyncpa [#allocation1], 1

</llo_original>
